<compile_context>
chip_gen: v7x
topology: tpu7x:2x2x1
jax: 0.10.0
libtpu: 0.0.40
codegen_flags: <defaults>
</compile_context>

<pallas_src>
import jax
import jax.numpy as jnp
from jax.experimental import pallas as pl
from jax.experimental.pallas import tpu as pltpu


def _fscore_kernel(inv_temp_ref, logits_ref, labels_ref, tp_out_ref, pp_out_ref,
                   tp_acc, pp_acc):
    j = pl.program_id(1)

    @pl.when(j == 0)
    def _():
        tp_acc[...] = jnp.zeros_like(tp_acc)
        pp_acc[...] = jnp.zeros_like(pp_acc)

    x = logits_ref[...].astype(jnp.float32)            # (C, TM)
    labels = labels_ref[...]                           # (1, TM) int32, -1 = padding
    inv_t = inv_temp_ref[...]                          # (C, 1)

    z = x * inv_t                                      # pred / temp
    m = jnp.max(z, axis=0, keepdims=True)              # (1, TM) sublane reduce over C
    # softmax(z) / max_c softmax(z)  ==  exp(z - max_c z)
    q = jnp.exp(z - m)                                 # (C, TM)

    c_iota = jax.lax.broadcasted_iota(jnp.int32, q.shape, 0)
    # TP: one-hot select; padded columns have label -1 which never matches.
    tp_acc[...] += jnp.where(c_iota == labels, q, 0.0)
    # TPFP: padded columns would contribute exp(0)=1 per class -> mask them.
    pp_acc[...] += jnp.where(labels >= 0, q, 0.0)

    @pl.when(j == pl.num_programs(1) - 1)
    def _():
        tp_out_ref[0, :, :] = jnp.sum(tp_acc[...], axis=1, keepdims=True)   # (C, 1)
        pp_out_ref[0, :, :] = jnp.sum(pp_acc[...], axis=1, keepdims=True)   # (C, 1)


def fscore_pallas(pred, y_true, temp, eps=1e-6):
    """pred: (B, C) float logits, y_true: (B,) int class indices, temp: (C,)."""
    B, C = pred.shape

    LANE = 128
    NUM_SLICES = 2   # 2 TCs on v7x; a cheap sequential outer loop on v5e/v6e.

    # Large lane-aligned sample tile to amortize ~0.35 us/grid-step overhead.
    # tm=32768 keeps double-buffered tiles + 2 accumulators ~6 MiB (fits the
    # default scoped-VMEM limit on every generation).
    per_slice = (B + NUM_SLICES - 1) // NUM_SLICES
    tm = min(32768, ((per_slice + LANE - 1) // LANE) * LANE)
    tiles_per_slice = (per_slice + tm - 1) // tm
    b_pad = NUM_SLICES * tiles_per_slice * tm

    # class-major layout; the (B, C=7) transpose is tiny and buys lane-dense tiles
    logits_t = jnp.transpose(pred, (1, 0))             # (C, B), native dtype
    labels = y_true.astype(jnp.int32)
    if b_pad != B:
        logits_t = jnp.pad(logits_t, ((0, 0), (0, b_pad - B)))
        labels = jnp.pad(labels, (0, b_pad - B), constant_values=-1)
    labels = labels.reshape(1, b_pad)
    inv_temp = (1.0 / temp.astype(jnp.float32)).reshape(C, 1)

    grid = (NUM_SLICES, tiles_per_slice)

    tp_parts, pp_parts = pl.pallas_call(
        _fscore_kernel,
        out_shape=(
            jax.ShapeDtypeStruct((NUM_SLICES, C, 1), jnp.float32),
            jax.ShapeDtypeStruct((NUM_SLICES, C, 1), jnp.float32),
        ),
        grid_spec=pltpu.PrefetchScalarGridSpec(
            num_scalar_prefetch=0,
            grid=grid,
            in_specs=[
                pl.BlockSpec((C, 1), lambda s, j: (0, 0)),          # 1/temp (resident)
                pl.BlockSpec((C, tm),
                             lambda s, j: (0, s * tiles_per_slice + j)),  # logits tile
                pl.BlockSpec((1, tm),
                             lambda s, j: (0, s * tiles_per_slice + j)),  # labels tile
            ],
            out_specs=(
                pl.BlockSpec((1, C, 1), lambda s, j: (s, 0, 0)),    # per-slice TP
                pl.BlockSpec((1, C, 1), lambda s, j: (s, 0, 0)),    # per-slice TPFP
            ),
            scratch_shapes=[pltpu.VMEM((C, tm), jnp.float32)] * 2,
        ),
        compiler_params=pltpu.CompilerParams(
            dimension_semantics=("parallel", "arbitrary"),
        ),
    )(inv_temp, logits_t, labels)

    tp = jnp.sum(tp_parts[:, :, 0], axis=0)                         # (C,)
    tpfp = jnp.sum(pp_parts[:, :, 0], axis=0)                       # (C,)
    # Nk: label histogram — reads only 4 B/sample, no need to run it in-kernel.
    nk = jnp.bincount(y_true.astype(jnp.int32), length=C).astype(jnp.float32)

    f = 2.0 * tp / (tpfp + nk + eps)
    return 1.0 - jnp.mean(f)


def fscore_ref(pred, y_true, temp, eps=1e-6):
    # pure-JAX reference of the PyTorch forward
    z = pred / temp[None, :]
    p = jax.nn.softmax(z, axis=1)
    p = p / jnp.max(p, axis=1, keepdims=True)
    oh = jax.nn.one_hot(y_true, pred.shape[1], dtype=p.dtype)
    tp = jnp.sum(p * oh, axis=0, keepdims=True)
    tpfp = jnp.sum(p, axis=0, keepdims=True)
    nk = jnp.sum(oh, axis=0, keepdims=True)
    return 1.0 - jnp.mean(2.0 * tp / (tpfp + nk + eps))


if __name__ == "__main__":
    key = jax.random.PRNGKey(0)
    k1, k2 = jax.random.split(key)

    B, C = 64, 7  # ncls is fixed to 7 by the module
    temp = jnp.array([1.0, 0.1, 0.5, 0.2, 0.07, 0.05, 0.01], dtype=jnp.float32)
    pred = jax.random.normal(k1, (B, C), dtype=jnp.float32)
    y_true = jax.random.randint(k2, (B,), 0, C, dtype=jnp.int32)

    loss = fscore_pallas(pred, y_true, temp)
    loss = jax.block_until_ready(loss)

    ref = fscore_ref(pred, y_true, temp)
    assert jnp.allclose(loss, ref, atol=1e-5, rtol=1e-4), (loss, ref)

    print("KERNEL_OK")
</pallas_src>

<mosaic_0001>
module attributes {stable_mosaic.version = 11 : i64} {
  func.func @_fscore_kernel(%arg0: i32, %arg1: i32, %arg2: memref<7x1xf32, #tpu.memory_space<vmem>>, %arg3: memref<7x128xf32, #tpu.memory_space<vmem>>, %arg4: memref<1x128xi32, #tpu.memory_space<vmem>>, %arg5: memref<1x7x1xf32, #tpu.memory_space<vmem>>, %arg6: memref<1x7x1xf32, #tpu.memory_space<vmem>>, %arg7: memref<7x128xf32, #tpu.memory_space<vmem>>, %arg8: memref<7x128xf32, #tpu.memory_space<vmem>>) attributes {dimension_semantics = [#tpu.dimension_semantics<parallel>, #tpu.dimension_semantics<arbitrary>], iteration_bounds = array<i64: 2, 1>, scalar_prefetch = 0 : i64, scratch_operands = 2 : i64, tpu.core_type = #tpu.core_type<tc>, window_params = [{pipeline_mode = #tpu.pipeline_mode<synchronous>, transform_indices = @transform_0, window_bounds = array<i64: 7, 1>}, {transform_indices = @transform_1, window_bounds = array<i64: 7, 128>}, {transform_indices = @transform_2, window_bounds = array<i64: 1, 128>}, {transform_indices = @transform_3, window_bounds = array<i64: 1, 7, 1>}, {transform_indices = @transform_4, window_bounds = array<i64: 1, 7, 1>}]} {
    %c0_i32 = arith.constant 0 : i32
    %0 = arith.cmpi eq, %arg1, %c0_i32 : i32
    %1 = arith.extui %0 : i1 to i32
    %c0_i32_0 = arith.constant 0 : i32
    %2 = arith.cmpi ne, %1, %c0_i32_0 : i32
    scf.if %2 {
      %cst_19 = arith.constant 0.000000e+00 : f32
      %33 = vector.broadcast %cst_19 : f32 to vector<7x128xf32>
      %c0_20 = arith.constant 0 : index
      %c0_21 = arith.constant 0 : index
      %34 = vector.load %arg7[%c0_20, %c0_21] : memref<7x128xf32, #tpu.memory_space<vmem>>, vector<7x128xf32>
      tpu.vector_store %arg7[%c0_20, %c0_21], %33 {strides = array<i32>} : memref<7x128xf32, #tpu.memory_space<vmem>>, vector<7x128xf32>,
      %cst_22 = arith.constant 0.000000e+00 : f32
      %35 = vector.broadcast %cst_22 : f32 to vector<7x128xf32>
      %c0_23 = arith.constant 0 : index
      %c0_24 = arith.constant 0 : index
      %36 = vector.load %arg8[%c0_23, %c0_24] : memref<7x128xf32, #tpu.memory_space<vmem>>, vector<7x128xf32>
      tpu.vector_store %arg8[%c0_23, %c0_24], %35 {strides = array<i32>} : memref<7x128xf32, #tpu.memory_space<vmem>>, vector<7x128xf32>,
    } else {
    }
    %c0 = arith.constant 0 : index
    %c0_1 = arith.constant 0 : index
    %3 = vector.load %arg3[%c0, %c0_1] : memref<7x128xf32, #tpu.memory_space<vmem>>, vector<7x128xf32>
    %c0_2 = arith.constant 0 : index
    %c0_3 = arith.constant 0 : index
    %4 = vector.load %arg4[%c0_2, %c0_3] : memref<1x128xi32, #tpu.memory_space<vmem>>, vector<1x128xi32>
    %c0_4 = arith.constant 0 : index
    %c0_5 = arith.constant 0 : index
    %5 = vector.load %arg2[%c0_4, %c0_5] : memref<7x1xf32, #tpu.memory_space<vmem>>, vector<7x1xf32>
    %6 = vector.broadcast %5 : vector<7x1xf32> to vector<7x128xf32>
    %7 = arith.mulf %3, %6 : vector<7x128xf32>
    %cst = arith.constant dense<0xFF800000> : vector<128xf32>
    %8 = vector.multi_reduction <maximumf>, %7, %cst [0] : vector<7x128xf32> to vector<128xf32>
    %9 = vector.shape_cast %8 : vector<128xf32> to vector<1x128xf32>
    %10 = vector.broadcast %9 : vector<1x128xf32> to vector<7x128xf32>
    %11 = arith.subf %7, %10 : vector<7x128xf32>
    %12 = math.exp %11 : vector<7x128xf32>
    %13 = tpu.iota {dimensions = array<i32: 0>} : vector<7x128xi32>
    %c0_6 = arith.constant 0 : index
    %c0_7 = arith.constant 0 : index
    %14 = vector.load %arg7[%c0_6, %c0_7] : memref<7x128xf32, #tpu.memory_space<vmem>>, vector<7x128xf32>
    %15 = vector.broadcast %4 : vector<1x128xi32> to vector<7x128xi32>
    %16 = arith.cmpi eq, %13, %15 : vector<7x128xi32>
    %cst_8 = arith.constant 0.000000e+00 : f32
    %17 = vector.broadcast %cst_8 : f32 to vector<7x128xf32>
    %18 = arith.select %16, %12, %17 : vector<7x128xi1>, vector<7x128xf32>
    %19 = arith.addf %14, %18 : vector<7x128xf32>
    %c0_9 = arith.constant 0 : index
    %c0_10 = arith.constant 0 : index
    %20 = vector.load %arg7[%c0_9, %c0_10] : memref<7x128xf32, #tpu.memory_space<vmem>>, vector<7x128xf32>
    tpu.vector_store %arg7[%c0_9, %c0_10], %19 {strides = array<i32>} : memref<7x128xf32, #tpu.memory_space<vmem>>, vector<7x128xf32>,
    %c0_11 = arith.constant 0 : index
    %c0_12 = arith.constant 0 : index
    %21 = vector.load %arg8[%c0_11, %c0_12] : memref<7x128xf32, #tpu.memory_space<vmem>>, vector<7x128xf32>
    %c0_i32_13 = arith.constant 0 : i32
    %22 = vector.broadcast %c0_i32_13 : i32 to vector<1x128xi32>
    %23 = arith.cmpi sge, %4, %22 : vector<1x128xi32>
    %cst_14 = arith.constant 0.000000e+00 : f32
    %24 = vector.shape_cast %23 : vector<1x128xi1> to vector<1x128xi1>
    %25 = vector.broadcast %24 : vector<1x128xi1> to vector<7x128xi1>
    %26 = vector.broadcast %cst_14 : f32 to vector<7x128xf32>
    %27 = arith.select %25, %12, %26 : vector<7x128xi1>, vector<7x128xf32>
    %28 = arith.addf %21, %27 : vector<7x128xf32>
    %c0_15 = arith.constant 0 : index
    %c0_16 = arith.constant 0 : index
    %29 = vector.load %arg8[%c0_15, %c0_16] : memref<7x128xf32, #tpu.memory_space<vmem>>, vector<7x128xf32>
    tpu.vector_store %arg8[%c0_15, %c0_16], %28 {strides = array<i32>} : memref<7x128xf32, #tpu.memory_space<vmem>>, vector<7x128xf32>,
    %c0_i32_17 = arith.constant 0 : i32
    %30 = arith.cmpi eq, %arg1, %c0_i32_17 : i32
    %31 = arith.extui %30 : i1 to i32
    %c0_i32_18 = arith.constant 0 : i32
    %32 = arith.cmpi ne, %31, %c0_i32_18 : i32
    scf.if %32 {
      %c0_19 = arith.constant 0 : index
      %c0_20 = arith.constant 0 : index
      %33 = vector.load %arg7[%c0_19, %c0_20] : memref<7x128xf32, #tpu.memory_space<vmem>>, vector<7x128xf32>
      %cst_21 = arith.constant dense<0.000000e+00> : vector<7xf32>
      %34 = vector.multi_reduction <add>, %33, %cst_21 [1] : vector<7x128xf32> to vector<7xf32>
      %35 = vector.shape_cast %34 : vector<7xf32> to vector<7x1xf32>
      %c0_22 = arith.constant 0 : index
      %c0_23 = arith.constant 0 : index
      %c0_24 = arith.constant 0 : index
      %36 = vector.load %arg5[%c0_22, %c0_23, %c0_24] : memref<1x7x1xf32, #tpu.memory_space<vmem>>, vector<1x7x1xf32>
      %37 = vector.shape_cast %36 : vector<1x7x1xf32> to vector<7x1xf32>
      %38 = vector.shape_cast %35 : vector<7x1xf32> to vector<1x7x1xf32>
      tpu.vector_store %arg5[%c0_22, %c0_23, %c0_24], %38 {strides = array<i32>} : memref<1x7x1xf32, #tpu.memory_space<vmem>>, vector<1x7x1xf32>,
      %c0_25 = arith.constant 0 : index
      %c0_26 = arith.constant 0 : index
      %39 = vector.load %arg8[%c0_25, %c0_26] : memref<7x128xf32, #tpu.memory_space<vmem>>, vector<7x128xf32>
      %cst_27 = arith.constant dense<0.000000e+00> : vector<7xf32>
      %40 = vector.multi_reduction <add>, %39, %cst_27 [1] : vector<7x128xf32> to vector<7xf32>
      %41 = vector.shape_cast %40 : vector<7xf32> to vector<7x1xf32>
      %c0_28 = arith.constant 0 : index
      %c0_29 = arith.constant 0 : index
      %c0_30 = arith.constant 0 : index
      %42 = vector.load %arg6[%c0_28, %c0_29, %c0_30] : memref<1x7x1xf32, #tpu.memory_space<vmem>>, vector<1x7x1xf32>
      %43 = vector.shape_cast %42 : vector<1x7x1xf32> to vector<7x1xf32>
      %44 = vector.shape_cast %41 : vector<7x1xf32> to vector<1x7x1xf32>
      tpu.vector_store %arg6[%c0_28, %c0_29, %c0_30], %44 {strides = array<i32>} : memref<1x7x1xf32, #tpu.memory_space<vmem>>, vector<1x7x1xf32>,
    } else {
    }
    return
  }
  func.func @transform_0(%arg0: i32, %arg1: i32) -> (i32, i32) {
    %c0_i32 = arith.constant 0 : i32
    %c0_i32_0 = arith.constant 0 : i32
    %c0_i32_1 = arith.constant 0 : i32
    return %c0_i32, %c0_i32_0 : i32, i32
  }
  func.func @transform_1(%arg0: i32, %arg1: i32) -> (i32, i32) {
    %c1_i32 = arith.constant 1 : i32
    %0 = arith.muli %arg0, %c1_i32 : i32
    %1 = arith.addi %0, %arg1 : i32
    %c0_i32 = arith.constant 0 : i32
    %c0_i32_0 = arith.constant 0 : i32
    return %c0_i32, %1 : i32, i32
  }
  func.func @transform_2(%arg0: i32, %arg1: i32) -> (i32, i32) {
    %c1_i32 = arith.constant 1 : i32
    %0 = arith.muli %arg0, %c1_i32 : i32
    %1 = arith.addi %0, %arg1 : i32
    %c0_i32 = arith.constant 0 : i32
    %c0_i32_0 = arith.constant 0 : i32
    return %c0_i32, %1 : i32, i32
  }
  func.func @transform_3(%arg0: i32, %arg1: i32) -> (i32, i32, i32) {
    %c0_i32 = arith.constant 0 : i32
    %c0_i32_0 = arith.constant 0 : i32
    %c0_i32_1 = arith.constant 0 : i32
    return %arg0, %c0_i32, %c0_i32_0 : i32, i32, i32
  }
  func.func @transform_4(%arg0: i32, %arg1: i32) -> (i32, i32, i32) {
    %c0_i32 = arith.constant 0 : i32
    %c0_i32_0 = arith.constant 0 : i32
    %c0_i32_1 = arith.constant 0 : i32
    return %arg0, %c0_i32, %c0_i32_0 : i32, i32, i32
  }
}

</mosaic_0001>

<llo_original>
// kernel: tpu_custom_call.1
$region0: #{tpu_custom_call.1}
  #allocation0 [shape = 'u32[]', space=smem, size = 0x4, offset = 0x4, fixed_abs, tag = 'smem constant byte address 0x4 - core index']
  #allocation1 [shape = 'u32[144,128]{1,0:T(1,128)}', space=vmem, size = 0x12000, scoped, tag = 'internal scratch']
  #allocation2 [shape = 'f32[7,128]{1,0:T(8,128)}', space=vmem, size = 0x1000, scoped, tag = 'scratch operand']
  #allocation3 [shape = 'f32[7,128]{1,0:T(8,128)}', space=vmem, size = 0x1000, scoped, tag = 'scratch operand']
  %s0 = inlined_call_operand.vmem [shape: f32[7,1], index: 0, kind: input, shape index: {}]
  %s1 = inlined_call_operand.hbm [shape: f32[7,256], index: 1, kind: input, shape index: {}]
  %s2 = inlined_call_operand.vmem [shape: s32[1,256], index: 2, kind: input, shape index: {}]
  %s3 = inlined_call_operand.vmem [shape: f32[2,7,1], index: 3, kind: output, shape index: {0}]
  %s4 = inlined_call_operand.vmem [shape: f32[2,7,1], index: 4, kind: output, shape index: {1}]
  %5 = xla_tuple %s3, %s4
  %s6 = sld [smem:[#allocation0]]
  $region65: #{tpu_custom_call.1} parent=0
    _
  %s8 = ssub.s32 1, %s6
  %s9 = scalar_select 0, %s8, %s6
  $region1: #{tpu_custom_call.1} parent=0
    #allocation4 [shape = 'u8[8192]{0}', space=vmem, size = 0x2000, scoped, tag = 'input window, operand 1']
    #allocation5 [shape = 's32[2]{0}', space=sflag, size = 0x8, scoped, tag = 'scoped memory for tpu_custom_call.1']
    %10 = vsyncpa [#allocation5], 0
    %s11 = scalar_lea.sflag [#allocation5], 1
    %12 = vsyncpa %s11, 0
    loop: start=0, step=1, limit=4
    $region2: #{tpu_custom_call.1} parent=1 // loop_pre_header
      _
    $region3: #{tpu_custom_call.1} parent=1 // loop_header
      %s14 = sphi 0, %s18
      %p15 = scmp.ge.s32.totalorder %s14, 4
      %s21 = sphi 0, %s33
      %s22 = sphi 0, %s29
      %s23 = sphi 0, %s21
      %s24 = sphi 0, %s22
      %s25 = sphi 0, %s23
      %s26 = sphi 0, %s24
      %s34 = sphi 0, %s34
      %s36 = sphi 0, %s34
      %s37 = sphi 0, %s36
      %s51 = sphi 0, %s37
      %s59 = sphi 0, %s61
      %s62 = sphi 0, %s59
      %s63 = sphi 0, %s62
      %s79 = sphi 0, %s63
      %s87 = sphi 0, %s89
      %s90 = sphi 0, %s87
      %s91 = sphi 0, %s90
      %s107 = sphi 0, %s91
      %s113 = sphi 0, %s115
      %s116 = sphi 0, %s113
      %s117 = sphi 0, %s116
      %s133 = sphi 0, %s117
      %s139 = sphi 0, %s141
      %s142 = sphi 0, %s139
      %s143 = sphi 0, %s142
      %s159 = sphi 0, %s143
    $region4: #{tpu_custom_call.1} parent=1 // loop_header_branch
      %17 = sbr.rel (%p15) target = $region8
    $region5: #{tpu_custom_call.1} parent=1 // loop_body
      %s19 = ssub.s32 %s14, 1
      %s20 = ssub.s32 %s14, 2
      %s27 = sadd.s32 1, %s22
      %p28 = scmp.ge.s32.totalorder %s27, 1
      %s29 = scalar_select %p28, 0, %s27
      %s30 = sadd.s32 1, %s21
      %s31 = scalar_select %p28, %s30, %s21
      %p32 = scmp.ge.s32.totalorder %s31, 2
      %s33 = scalar_select %p32, 0, %s31
      %s35 = sadd.s32 %s34, 1
      %p38 = scmp.eq.s32.totalorder %s14, 1
      %p39 = scmp.ne.s32.totalorder %s34, %s36
      %p40 = scmp.eq.s32.totalorder %s14, 0
      %p41 = por %p39, %p40
      %p42 = scmp.ne.s32.totalorder %s34, %s36
      %p43 = scmp.eq.s32.totalorder %s19, 1
      %p44 = por %p42, %p43
      %p45 = scmp.ne.s32.totalorder %s36, %s37
      %p46 = scmp.eq.s32.totalorder %s19, 0
      %p47 = por %p45, %p46
      %p48 = scmp.ne.s32.totalorder %s36, %s37
      %p49 = scmp.eq.s32.totalorder %s20, 1
      %p50 = por %p48, %p49
      %p52 = scmp.ne.s32.totalorder %s37, %s51
      %p53 = scmp.eq.s32.totalorder %s20, 0
      %p54 = por %p52, %p53
      %s55 = sadd.s32 %s21, %s22
      %s56 = sadd.s32 %s33, %s29
      %s57 = ssub.s32 %s55, %s56
      %p58 = scmp.eq.s32.totalorder %s57, 0
      %s60 = sadd.s32 %s59, 1
      %s61 = scalar_select %p58, %s59, %s60
      %p64 = pneg %p58
      %p65 = scmp.eq.s32.totalorder %s14, 1
      %p66 = por %p64, %p65
      %p67 = scmp.ne.s32.totalorder %s59, %s62
      %p68 = scmp.eq.s32.totalorder %s14, 0
      %p69 = por %p67, %p68
      %p70 = scmp.ne.s32.totalorder %s59, %s62
      %p71 = scmp.eq.s32.totalorder %s19, 1
      %p72 = por %p70, %p71
      %p73 = scmp.ne.s32.totalorder %s62, %s63
      %p74 = scmp.eq.s32.totalorder %s19, 0
      %p75 = por %p73, %p74
      %p76 = scmp.ne.s32.totalorder %s62, %s63
      %p77 = scmp.eq.s32.totalorder %s20, 1
      %p78 = por %p76, %p77
      %p80 = scmp.ne.s32.totalorder %s63, %s79
      %p81 = scmp.eq.s32.totalorder %s20, 0
      %p82 = por %p80, %p81
      %s83 = sadd.s32 %s21, %s22
      %s84 = sadd.s32 %s33, %s29
      %s85 = ssub.s32 %s83, %s84
      %p86 = scmp.eq.s32.totalorder %s85, 0
      %s88 = sadd.s32 %s87, 1
      %s89 = scalar_select %p86, %s87, %s88
      %p92 = pneg %p86
      %p93 = scmp.eq.s32.totalorder %s14, 1
      %p94 = por %p92, %p93
      %p95 = scmp.ne.s32.totalorder %s87, %s90
      %p96 = scmp.eq.s32.totalorder %s14, 0
      %p97 = por %p95, %p96
      %p98 = scmp.ne.s32.totalorder %s87, %s90
      %p99 = scmp.eq.s32.totalorder %s19, 1
      %p100 = por %p98, %p99
      %p101 = scmp.ne.s32.totalorder %s90, %s91
      %p102 = scmp.eq.s32.totalorder %s19, 0
      %p103 = por %p101, %p102
      %p104 = scmp.ne.s32.totalorder %s90, %s91
      %p105 = scmp.eq.s32.totalorder %s20, 1
      %p106 = por %p104, %p105
      %p108 = scmp.ne.s32.totalorder %s91, %s107
      %p109 = scmp.eq.s32.totalorder %s20, 0
      %p110 = por %p108, %p109
      %s111 = ssub.s32 %s21, %s33
      %p112 = scmp.eq.s32.totalorder %s111, 0
      %s114 = sadd.s32 %s113, 1
      %s115 = scalar_select %p112, %s113, %s114
      %p118 = pneg %p112
      %p119 = scmp.eq.s32.totalorder %s14, 1
      %p120 = por %p118, %p119
      %p121 = scmp.ne.s32.totalorder %s113, %s116
      %p122 = scmp.eq.s32.totalorder %s14, 0
      %p123 = por %p121, %p122
      %p124 = scmp.ne.s32.totalorder %s113, %s116
      %p125 = scmp.eq.s32.totalorder %s19, 1
      %p126 = por %p124, %p125
      %p127 = scmp.ne.s32.totalorder %s116, %s117
      %p128 = scmp.eq.s32.totalorder %s19, 0
      %p129 = por %p127, %p128
      %p130 = scmp.ne.s32.totalorder %s116, %s117
      %p131 = scmp.eq.s32.totalorder %s20, 1
      %p132 = por %p130, %p131
      %p134 = scmp.ne.s32.totalorder %s117, %s133
      %p135 = scmp.eq.s32.totalorder %s20, 0
      %p136 = por %p134, %p135
      %s137 = ssub.s32 %s21, %s33
      %p138 = scmp.eq.s32.totalorder %s137, 0
      %s140 = sadd.s32 %s139, 1
      %s141 = scalar_select %p138, %s139, %s140
      %p144 = pneg %p138
      %p145 = scmp.eq.s32.totalorder %s14, 1
      %p146 = por %p144, %p145
      %p147 = scmp.ne.s32.totalorder %s139, %s142
      %p148 = scmp.eq.s32.totalorder %s14, 0
      %p149 = por %p147, %p148
      %p150 = scmp.ne.s32.totalorder %s139, %s142
      %p151 = scmp.eq.s32.totalorder %s19, 1
      %p152 = por %p150, %p151
      %p153 = scmp.ne.s32.totalorder %s142, %s143
      %p154 = scmp.eq.s32.totalorder %s19, 0
      %p155 = por %p153, %p154
      %p156 = scmp.ne.s32.totalorder %s142, %s143
      %p157 = scmp.eq.s32.totalorder %s20, 1
      %p158 = por %p156, %p157
      %p160 = scmp.ne.s32.totalorder %s143, %s159
      %p161 = scmp.eq.s32.totalorder %s20, 0
      %p162 = por %p160, %p161
      %p163 = scmp.le.s32.totalorder 1, %s14
      %p164 = scmp.lt.s32.totalorder %s14, 3
      %p165 = pnand %p163, %p164
      %p166 = pneg %p165
      // Predicated region
      $region9: #{tpu_custom_call.1} parent=5 // pred_check
        _
      $region10: #{tpu_custom_call.1} parent=5 // pred_check_branch
        %168 = sbr.rel (%p165) target = $region12
      $region11: #{tpu_custom_call.1} parent=5 // pred_region
        %s169 = ssub.s32 %s14, 1
        // Predicated region
        $region13: #{tpu_custom_call.1} parent=11 // pred_check
          %p170 = pneg %p47
        $region14: #{tpu_custom_call.1} parent=11 // pred_check_branch
          %172 = sbr.rel (%p170) target = $region16
        $region15: #{tpu_custom_call.1} parent=11 // pred_region
          _
        $region16: #{tpu_custom_call.1} parent=11 // pred_fallthru
          _
      $region12: #{tpu_custom_call.1} parent=5 // pred_fallthru
        _
      %p173 = scmp.lt.s32.totalorder %s14, 2
      // Predicated region
      $region17: #{tpu_custom_call.1} parent=5 // pred_check
        %p174 = pneg %p173
      $region18: #{tpu_custom_call.1} parent=5 // pred_check_branch
        %176 = sbr.rel (%p174) target = $region20
      $region19: #{tpu_custom_call.1} parent=5 // pred_region
        // Predicated region
        $region21: #{tpu_custom_call.1} parent=19 // pred_check
          %p177 = pneg %p69
        $region22: #{tpu_custom_call.1} parent=19 // pred_check_branch
          %179 = sbr.rel (%p177) target = $region24
        $region23: #{tpu_custom_call.1} parent=19 // pred_region
          %s180 = sand.u32 %s59, 1
          %s181 = scalar_lea.sflag [#allocation5], %s180
          %s182 = sand.u32 %s59, 1
          %s183 = smul.addr %s182, 8
          %s184 = scalar_lea.vmem [#allocation4], %s183
          %s185 = sadd.s32 %s21, %s22
          %s187 = ssub.s32 128, 128
          %188 = vsyncadd %s181, %s187
          %s189 = smul.addr %s185, 128
          %s190 = scalar_lea.hbm %s1, %s189
          %s192 = sshll.u32 %s184, 4
          %s193 = int_to_ptr.vmem [resolvable:$true] %s192
          %195 = dma.hbm_to_vmem [thread:$0]  %s190, 128, %s193, %s181
        $region24: #{tpu_custom_call.1} parent=19 // pred_fallthru
          _
        // Predicated region
        $region25: #{tpu_custom_call.1} parent=19 // pred_check
          %p196 = pneg %p97
        $region26: #{tpu_custom_call.1} parent=19 // pred_check_branch
          %198 = sbr.rel (%p196) target = $region28
        $region27: #{tpu_custom_call.1} parent=19 // pred_region
          %s199 = sadd.s32 %s21, %s22
          %p200 = scmp.lt.s32.totalorder %s199, 1
          %s201 = scalar_select %p200, %s199, 1
          %s202 = scalar_lea.vmem %s2, %s201
          %s203 = sadd.s32 %s21, %s22
        $region28: #{tpu_custom_call.1} parent=19 // pred_fallthru
          _
      $region20: #{tpu_custom_call.1} parent=5 // pred_fallthru
        _
      %p204 = scmp.le.s32.totalorder 1, %s14
      %p205 = scmp.lt.s32.totalorder %s14, 3
      %p206 = pnand %p204, %p205
      %p207 = pneg %p206
      // Predicated region
      $region29: #{tpu_custom_call.1} parent=5 // pred_check
        _
      $region30: #{tpu_custom_call.1} parent=5 // pred_check_branch
        %209 = sbr.rel (%p206) target = $region32
      $region31: #{tpu_custom_call.1} parent=5 // pred_region
        %s210 = ssub.s32 %s14, 1
        %s211 = sand.u32 %s62, 1
        %s212 = scalar_lea.sflag [#allocation5], %s211
        %s213 = sand.u32 %s62, 1
        %s214 = smul.addr %s213, 8
        %s215 = scalar_lea.vmem [#allocation4], %s214
        // Predicated region
        $region33: #{tpu_custom_call.1} parent=31 // pred_check
          %p216 = pneg %p75
        $region34: #{tpu_custom_call.1} parent=31 // pred_check_branch
          %218 = sbr.rel (%p216) target = $region36
        $region35: #{tpu_custom_call.1} parent=31 // pred_region
          %219 = dma.done %s212, 128
        $region36: #{tpu_custom_call.1} parent=31 // pred_fallthru
          _
        %p220 = pneg %p47
        %p221 = pneg %p44
        %s222 = sand.u32 %s62, 1
        %s223 = scalar_lea.sflag [#allocation5], %s222
        %s224 = sand.u32 %s62, 1
        %s225 = smul.addr %s224, 8
        %s226 = scalar_lea.vmem [#allocation4], %s225
        %p227 = pneg %p75
        %p228 = pneg %p72
        %s229 = sadd.s32 %s23, %s24
        %p230 = scmp.lt.s32.totalorder %s229, 1
        %s231 = scalar_select %p230, %s229, 1
        %s232 = scalar_lea.vmem %s2, %s231
        %p233 = pneg %p103
        %p234 = pneg %p100
        %p235 = pneg %p129
        %p236 = pneg %p126
        %p237 = scmp.lt.s32.totalorder %s23, 1
        %s238 = scalar_select %p237, %s23, 1
        %s239 = smul.addr %s238, 8
        %s240 = scalar_lea.vmem %s3, %s239
        %p241 = pneg %p155
        %p242 = pneg %p152
        %p243 = scmp.lt.s32.totalorder %s23, 1
        %s244 = scalar_select %p243, %s23, 1
        %s245 = smul.addr %s244, 8
        %s246 = scalar_lea.vmem %s4, %s245
        %s247 = sadd.s32 %s23, %s24
        %s248 = sadd.s32 %s23, %s24
        %p249 = scmp.lt.s32.totalorder %s248, 1
        %s250 = scalar_select %p249, %s248, 1
        %s251 = scalar_lea.vmem %s2, %s250
        %s252 = sadd.s32 %s23, %s24
        %p253 = scmp.lt.s32.totalorder %s23, 1
        %s254 = scalar_select %p253, %s23, 1
        %s255 = smul.addr %s254, 8
        %s256 = scalar_lea.vmem %s3, %s255
        %p257 = scmp.lt.s32.totalorder %s23, 1
        %s258 = scalar_select %p257, %s23, 1
        %s259 = smul.addr %s258, 8
        %s260 = scalar_lea.vmem %s4, %s259
        %p261 = scmp.eq.s32.totalorder %s24, 0
        // Predicated region
        $region37: #{tpu_custom_call.1} parent=31 // pred_check
          %p262 = pneg %p261
        $region38: #{tpu_custom_call.1} parent=31 // pred_check_branch
          %264 = sbr.rel (%p262) target = $region40
        $region39: #{tpu_custom_call.1} parent=31 // pred_region
          %265 = vst [vmem:[#allocation2] sm:$0x7f] 0.0
          %266 = vst [vmem:[#allocation3] sm:$0x7f] 0.0
        $region40: #{tpu_custom_call.1} parent=31 // pred_fallthru
          _
        %v267 = vld [vmem:[%s215] sm:$0x7f]
        %v268 = vld [vmem:[%s251] sm:$0x1]
        %v269 = vld [vmem:[%s0] sm:$0x7f]
        %271 = vset.pattern.permute.xlu0 0
        %272 = vperm.xlu0 %271, %v269
        %v273 = vpop.permute.xlu0 %272
        %v275 = vmul.f32 %v267, %v273
        %vm276 = vcmask 1046528
        %v277 = vsel %vm276, %v275, -inf
        %v278 = vrot.slane %v277, 4
        %v279 = vmax.f32 %v277, %v278
        %v280 = vrot.slane %v279, 2
        %v281 = vmax.f32 %v279, %v280
        %v282 = vrot.slane %v281, 1
        %v283 = vmax.f32 %v281, %v282
        %v284 = vsub.f32 %v275, %v283
        %v285 = vmul.f32 %v284, 1.442695
        %v286 = vpow.pop %v285
        %v287 = vlaneseq
        %v288 = vshrl.u32 %v287, 7
        %v289 = vld [vmem:[#allocation2] sm:$0x7f]
        %v290 = vlaneseq
        %v291 = vshrl.u32 %v290, 7
        %v292 = vsub.s32 0, %v291
        %v293 = vrot.slane %v268, %v292
        %vm294 = vcmp.eq.s32.totalorder %v288, %v293
        %v295 = vsel %vm294, %v286, 0.0
        %v296 = vadd.f32 %v289, %v295
        %297 = vst [vmem:[#allocation2] sm:$0x7f] %v296
        %v298 = vld [vmem:[#allocation3] sm:$0x7f]
        %vm299 = vcmp.ge.s32.totalorder %v268, 0
        %v300 = vsel %vm299, 1, 0
        %v301 = vlaneseq
        %v302 = vshrl.u32 %v301, 7
        %v303 = vsub.s32 0, %v302
        %v304 = vrot.slane %v300, %v303
        %vm305 = vcmp.eq.s32.totalorder %v304, 1
        %v306 = vsel %vm305, %v286, 0.0
        %v307 = vadd.f32 %v298, %v306
        %308 = vst [vmem:[#allocation3] sm:$0x7f] %v307
        // Predicated region
        $region41: #{tpu_custom_call.1} parent=31 // pred_check
          %p309 = pneg %p261
        $region42: #{tpu_custom_call.1} parent=31 // pred_check_branch
          %311 = sbr.rel (%p309) target = $region44
        $region43: #{tpu_custom_call.1} parent=31 // pred_region
          %v312 = vld [vmem:[#allocation2] sm:$0x7f]
          %v313 = vsel %vm276, %v312, 0.0
          %314 = vadd.xlane.f32.xlu0 %v313
          %v315 = vpop.xlane.xlu0 %314
          %vm316 = vcmask 6144
          %317 = vst.msk [vmem:[%s256] sm:$0x7f] %vm316, %v315
          %v318 = vld [vmem:[#allocation3] sm:$0x7f]
          %v319 = vsel %vm276, %v318, 0.0
          %320 = vadd.xlane.f32.xlu0 %v319
          %v321 = vpop.xlane.xlu0 %320
          %322 = vst.msk [vmem:[%s260] sm:$0x7f] %vm316, %v321
        $region44: #{tpu_custom_call.1} parent=31 // pred_fallthru
          _
        %p323 = scmp.lt.s32.totalorder %s23, 1
        %s324 = scalar_select %p323, %s23, 1
        %s325 = smul.addr %s324, 8
        %s326 = scalar_lea.vmem %s3, %s325
        %p327 = scmp.lt.s32.totalorder %s23, 1
        %s328 = scalar_select %p327, %s23, 1
        %s329 = smul.addr %s328, 8
        %s330 = scalar_lea.vmem %s4, %s329
        // Predicated region
        $region45: #{tpu_custom_call.1} parent=31 // pred_check
          %p331 = pneg %p126
        $region46: #{tpu_custom_call.1} parent=31 // pred_check_branch
          %333 = sbr.rel (%p331) target = $region48
        $region47: #{tpu_custom_call.1} parent=31 // pred_region
          _
        $region48: #{tpu_custom_call.1} parent=31 // pred_fallthru
          _
        // Predicated region
        $region49: #{tpu_custom_call.1} parent=31 // pred_check
          %p334 = pneg %p152
        $region50: #{tpu_custom_call.1} parent=31 // pred_check_branch
          %336 = sbr.rel (%p334) target = $region52
        $region51: #{tpu_custom_call.1} parent=31 // pred_region
          _
        $region52: #{tpu_custom_call.1} parent=31 // pred_fallthru
          _
      $region32: #{tpu_custom_call.1} parent=5 // pred_fallthru
        _
      %p337 = scmp.le.s32.totalorder 2, %s14
      // Predicated region
      $region53: #{tpu_custom_call.1} parent=5 // pred_check
        %p338 = pneg %p337
      $region54: #{tpu_custom_call.1} parent=5 // pred_check_branch
        %340 = sbr.rel (%p338) target = $region56
      $region55: #{tpu_custom_call.1} parent=5 // pred_region
        %s341 = ssub.s32 %s14, 2
        // Predicated region
        $region57: #{tpu_custom_call.1} parent=55 // pred_check
          %p342 = pneg %p132
        $region58: #{tpu_custom_call.1} parent=55 // pred_check_branch
          %344 = sbr.rel (%p342) target = $region60
        $region59: #{tpu_custom_call.1} parent=55 // pred_region
          %p345 = scmp.lt.s32.totalorder %s25, 1
          %s346 = scalar_select %p345, %s25, 1
          %s347 = smul.addr %s346, 8
          %s348 = scalar_lea.vmem %s3, %s347
        $region60: #{tpu_custom_call.1} parent=55 // pred_fallthru
          _
        // Predicated region
        $region61: #{tpu_custom_call.1} parent=55 // pred_check
          %p349 = pneg %p158
        $region62: #{tpu_custom_call.1} parent=55 // pred_check_branch
          %351 = sbr.rel (%p349) target = $region64
        $region63: #{tpu_custom_call.1} parent=55 // pred_region
          %p352 = scmp.lt.s32.totalorder %s25, 1
          %s353 = scalar_select %p352, %s25, 1
          %s354 = smul.addr %s353, 8
          %s355 = scalar_lea.vmem %s4, %s354
        $region64: #{tpu_custom_call.1} parent=55 // pred_fallthru
          _
      $region56: #{tpu_custom_call.1} parent=5 // pred_fallthru
        _
    $region6: #{tpu_custom_call.1} parent=1 // loop_footer
      %s18 = sadd.s32 1, %s14
    $region7: #{tpu_custom_call.1} parent=1 // loop_footer_branch
      %13 = sbr.rel target = $region3
    $region8: #{tpu_custom_call.1} parent=1 // loop_exit
      _
    %356 = vsyncpa [#allocation5], 1
    %s357 = scalar_lea.sflag [#allocation5], 1
    %358 = vsyncpa %s357, 1

</llo_original>
